<compile_context>
chip_gen: v6e
topology: v6e:2x2x1
jax: 0.10.0
libtpu: 0.0.40
codegen_flags: <defaults>
</compile_context>

<pallas_src>
import numpy as np
import jax
import jax.numpy as jnp
from jax import lax
from jax.experimental import pallas as pl
from jax.experimental.pallas import tpu as pltpu


def _largest_divisor_leq(n, cap):
    for d in range(min(n, cap), 0, -1):
        if n % d == 0:
            return d
    return 1


# ----------------------------------------------------------------------------
# Phase 1: fused input projection for both LSTM directions (hoisted matmul).
# ----------------------------------------------------------------------------
def _proj_kernel(x_ref, w_ref, b_ref, gf_ref, gb_ref):
    # x_ref: (Tp, B, E) bf16; w_ref: (E, 8H) bf16; b_ref: (1, 8H) f32.
    tp, b, e = x_ref.shape
    h4 = gf_ref.shape[-1]                       # 4H; split at 4H is lane-aligned
    x = x_ref[...].reshape(tp * b, e)           # leading-dim merge, layout no-op
    g = jnp.dot(x, w_ref[...], preferred_element_type=jnp.float32) + b_ref[...]
    g = g.reshape(tp, b, 2 * h4)
    gf_ref[...] = g[..., :h4].astype(jnp.bfloat16)
    gb_ref[...] = g[..., h4:].astype(jnp.bfloat16)


def _input_projection(x3d, wih_all, b_all, H):
    T, B, E = x3d.shape
    # ~512 activation rows per tile (mem-bound sweet spot), expressed in steps.
    Tp = max(1, min(T, 512 // max(B, 1)))
    grid = (pl.cdiv(T, Tp),)
    return pl.pallas_call(
        _proj_kernel,
        out_shape=(jax.ShapeDtypeStruct((T, B, 4 * H), jnp.bfloat16),
                   jax.ShapeDtypeStruct((T, B, 4 * H), jnp.bfloat16)),
        grid_spec=pltpu.PrefetchScalarGridSpec(
            num_scalar_prefetch=0, grid=grid,
            in_specs=[pl.BlockSpec((Tp, B, E), lambda i: (i, 0, 0)),
                      pl.BlockSpec((E, 8 * H), lambda i: (0, 0)),
                      pl.BlockSpec((1, 8 * H), lambda i: (0, 0))],
            out_specs=[pl.BlockSpec((Tp, B, 4 * H), lambda i: (i, 0, 0)),
                       pl.BlockSpec((Tp, B, 4 * H), lambda i: (i, 0, 0))]),
        compiler_params=pltpu.CompilerParams(
            dimension_semantics=("parallel",),
            vmem_limit_bytes=32 * 1024 * 1024),
    )(x3d, wih_all, b_all)


# ----------------------------------------------------------------------------
# Phase 2: chunked recurrence over T, interleaved fwd/bwd, fused MLP tail.
# ----------------------------------------------------------------------------
def _recurrence_kernel(gf_ref, gb_ref, whh_ref,
                       w1f_ref, w1b_ref, b1_ref, w2_ref, b2_ref,
                       out_ref,
                       h_sc, cf_sc, cb_sc, mf_sc, mb_sc):
    c = pl.program_id(0)
    G = pl.num_programs(0)
    H = cf_sc.shape[-1]
    Tc = gf_ref.shape[0]

    @pl.when(c == 0)
    def _():
        h_sc[...] = jnp.zeros_like(h_sc)
        cf_sc[...] = jnp.zeros_like(cf_sc)
        cb_sc[...] = jnp.zeros_like(cb_sc)
        mf_sc[...] = jnp.full_like(mf_sc, -jnp.inf)
        mb_sc[...] = jnp.full_like(mb_sc, -jnp.inf)

    def sigmoid_t(x):
        # 1 EUP push (tanh) instead of exp + reciprocal.
        return 0.5 * jnp.tanh(0.5 * x) + 0.5

    def cell(pre, c_prev):
        # pre already holds x_t @ W_ih + (b_ih + b_hh) + h @ W_hh.
        # Gate order i, f, g, o (PyTorch).
        i_g = sigmoid_t(pre[:, 0 * H:1 * H])
        f_g = sigmoid_t(pre[:, 1 * H:2 * H])
        g_g = jnp.tanh(pre[:, 2 * H:3 * H])
        o_g = sigmoid_t(pre[:, 3 * H:4 * H])
        c_new = f_g * c_prev + i_g * g_g
        h_new = o_g * jnp.tanh(c_new)
        return h_new, c_new

    whh = whh_ref[...]            # (2H, 8H) block-diagonal, bf16, resident
    h = h_sc[...]                 # (B, 2H) = [h_fwd | h_bwd]
    c_f = cf_sc[...]
    c_b = cb_sc[...]
    m_f = mf_sc[...]
    m_b = mb_sc[...]

    # Fully unrolled chunk of Tc timesteps (static Python loop == unrolled
    # fori_loop for this small trip count): one fused block-diagonal h@Whh
    # matmul per serial step, forward and backward directions interleaved.
    # Backward processes absolute time T-1 - (c*Tc + s), i.e. local index
    # Tc-1-s of the (G-1-c)-th gb chunk selected by its index_map.
    for s in range(Tc):
        rec = jnp.dot(h.astype(jnp.bfloat16), whh,
                      preferred_element_type=jnp.float32)          # (B, 8H)
        pre_f = gf_ref[s].astype(jnp.float32) + rec[:, :4 * H]
        pre_b = gb_ref[Tc - 1 - s].astype(jnp.float32) + rec[:, 4 * H:]
        h_f, c_f = cell(pre_f, c_f)
        h_b, c_b = cell(pre_b, c_b)
        m_f = jnp.maximum(m_f, h_f)
        m_b = jnp.maximum(m_b, h_b)
        h = jnp.concatenate([h_f, h_b], axis=-1)

    h_sc[...] = h
    cf_sc[...] = c_f
    cb_sc[...] = c_b
    mf_sc[...] = m_f
    mb_sc[...] = m_b

    @pl.when(c == G - 1)
    def _():
        # max over time of concat([h_f, h_b]) == concat of per-direction maxes.
        # W1 pre-split into fwd/bwd halves -> no lane concat needed; W2/b2 are
        # lane-padded to 128 so the final store is an unmasked full-lane vst.
        hid = (jnp.dot(m_f.astype(jnp.bfloat16), w1f_ref[...],
                       preferred_element_type=jnp.float32)
               + jnp.dot(m_b.astype(jnp.bfloat16), w1b_ref[...],
                         preferred_element_type=jnp.float32)
               + b1_ref[...])
        hid = jnp.maximum(hid, 0.0)                                  # ReLU
        out_ref[...] = (jnp.dot(hid.astype(jnp.bfloat16), w2_ref[...],
                                preferred_element_type=jnp.float32)
                        + b2_ref[...])


def bilstm_sentiment(words, p, *, chunk_cap=16):
    """words: (B, T) int32 token ids -> logits (B, num_classes)."""
    B, T = words.shape
    E = p["embed"].shape[1]
    H = p["whh_f"].shape[0]
    nfc = p["w1"].shape[1]
    C = p["w2"].shape[1]
    C_PAD = 128

    # Embedding lookup (gather) is glue; done in bf16 to halve HBM traffic.
    x = jnp.take(p["embed"].astype(jnp.bfloat16), words, axis=0)      # (B, T, E)
    x3d = jnp.transpose(x, (1, 0, 2))                                 # (T, B, E)

    # Hoisted input projection: both directions fused into one (E, 8H) matmul;
    # gate pre-activations stored in bf16.
    wih_all = jnp.concatenate([p["wih_f"], p["wih_b"]], axis=1).astype(jnp.bfloat16)
    b_all = jnp.concatenate([p["b_f"], p["b_b"]], axis=1)             # (1, 8H) f32
    gf, gb = _input_projection(x3d, wih_all, b_all, H)                # bf16 (T,B,4H)

    # Block-diagonal recurrent weight: [h_f | h_b] @ Whh_bd gives both
    # directions' h@Whh in a single K=2H matmul per serial step.
    whh_bd = jnp.zeros((2 * H, 8 * H), jnp.float32)
    whh_bd = whh_bd.at[:H, :4 * H].set(p["whh_f"])
    whh_bd = whh_bd.at[H:, 4 * H:].set(p["whh_b"])
    whh_bd = whh_bd.astype(jnp.bfloat16)

    # Lane-dense classifier output: pad num_classes -> 128, slice in wrapper.
    w2p = jnp.zeros((nfc, C_PAD), jnp.float32).at[:, :C].set(p["w2"]).astype(jnp.bfloat16)
    b2p = jnp.zeros((1, C_PAD), jnp.float32).at[:, :C].set(p["b2"])

    Tc = _largest_divisor_leq(T, chunk_cap)     # timesteps per grid step
    G = T // Tc

    # TODO(synk): on v7x (2 TensorCores) split the two directions across cores
    # (direction-parallel axis / pl.core_map) instead of interleaving them in
    # one loop body as done here for v5e/v6e.
    # TODO(synk): optionally fuse phase 1 into this kernel (project the current
    # fwd/bwd time chunks in-step) to remove the bf16 gate HBM round trip.
    const2 = lambda c: (0, 0)
    out_full = pl.pallas_call(
        _recurrence_kernel,
        out_shape=jax.ShapeDtypeStruct((B, C_PAD), jnp.float32),
        grid_spec=pltpu.PrefetchScalarGridSpec(
            num_scalar_prefetch=0, grid=(G,),
            in_specs=[
                pl.BlockSpec((Tc, B, 4 * H), lambda c: (c, 0, 0)),          # fwd gate chunk
                pl.BlockSpec((Tc, B, 4 * H), lambda c: (G - 1 - c, 0, 0)),  # bwd gate chunk
                pl.BlockSpec((2 * H, 8 * H), const2),                       # Whh block-diag
                pl.BlockSpec((H, nfc), const2),                             # W1 fwd half
                pl.BlockSpec((H, nfc), const2),                             # W1 bwd half
                pl.BlockSpec((1, nfc), const2),                             # b1
                pl.BlockSpec((nfc, C_PAD), const2),                         # W2 (lane-padded)
                pl.BlockSpec((1, C_PAD), const2),                           # b2 (lane-padded)
            ],
            out_specs=pl.BlockSpec((B, C_PAD), const2),
            scratch_shapes=[pltpu.VMEM((B, 2 * H), jnp.float32),            # h = [hf|hb]
                            pltpu.VMEM((B, H), jnp.float32),                # c fwd
                            pltpu.VMEM((B, H), jnp.float32),                # c bwd
                            pltpu.VMEM((B, H), jnp.float32),                # max fwd
                            pltpu.VMEM((B, H), jnp.float32)]),              # max bwd
        compiler_params=pltpu.CompilerParams(
            dimension_semantics=("arbitrary",),
            vmem_limit_bytes=48 * 1024 * 1024),
    )(gf, gb, whh_bd,
      p["w1"][:H].astype(jnp.bfloat16), p["w1"][H:].astype(jnp.bfloat16),
      p["b1"], w2p, b2p)
    return out_full[:, :C]


def init_params(key, vocab, E, H, nfc, C):
    ks = jax.random.split(key, 11)

    def u(k, shape, scale):
        return jax.random.uniform(k, shape, jnp.float32, -scale, scale)

    s_lstm = 1.0 / np.sqrt(H)
    s_1 = 1.0 / np.sqrt(2 * H)
    s_2 = 1.0 / np.sqrt(nfc)
    return dict(
        embed=jax.random.normal(ks[0], (vocab, E), jnp.float32) * 0.1,
        wih_f=u(ks[1], (E, 4 * H), s_lstm),
        whh_f=u(ks[2], (H, 4 * H), s_lstm),
        b_f=u(ks[3], (1, 4 * H), s_lstm),        # b_ih + b_hh folded together
        wih_b=u(ks[4], (E, 4 * H), s_lstm),
        whh_b=u(ks[5], (H, 4 * H), s_lstm),
        b_b=u(ks[6], (1, 4 * H), s_lstm),
        w1=u(ks[7], (2 * H, nfc), s_1),
        b1=u(ks[8], (1, nfc), s_1),
        w2=u(ks[9], (nfc, C), s_2),
        b2=u(ks[10], (1, C), s_2),
    )


def reference(words, p):
    """Pure-JAX f32 reference of the PyTorch forward pass."""
    x = jnp.take(p["embed"], words, axis=0).astype(jnp.float32)       # (B, T, E)
    B = x.shape[0]
    H = p["whh_f"].shape[0]
    xs = jnp.transpose(x, (1, 0, 2))                                  # (T, B, E)

    def run(wih, whh, b, seq):
        def step(carry, x_t):
            h, c = carry
            gates = x_t @ wih + h @ whh + b
            i = jax.nn.sigmoid(gates[:, :H])
            f = jax.nn.sigmoid(gates[:, H:2 * H])
            g = jnp.tanh(gates[:, 2 * H:3 * H])
            o = jax.nn.sigmoid(gates[:, 3 * H:])
            c = f * c + i * g
            h = o * jnp.tanh(c)
            return (h, c), h

        init = (jnp.zeros((B, H), jnp.float32), jnp.zeros((B, H), jnp.float32))
        _, hs = lax.scan(step, init, seq)
        return hs                                                     # (T, B, H)

    hf = run(p["wih_f"], p["whh_f"], p["b_f"], xs)
    hb = run(p["wih_b"], p["whh_b"], p["b_b"], xs[::-1])[::-1]
    out = jnp.concatenate([hf, hb], axis=-1)                          # (T, B, 2H)
    feat = jnp.max(out, axis=0)                                       # (B, 2H)
    hid = jnp.maximum(feat @ p["w1"] + p["b1"], 0.0)
    return hid @ p["w2"] + p["b2"]


if __name__ == "__main__":
    # Small, forward-consistent shapes.  B >= 8 (sublane-filling), H = 128 so
    # per-gate slices are 128-lane aligned.
    B, T = 8, 8              # batch, seq length
    VOCAB, E = 50, 16        # vocab size, embedding dim
    H, NFC, C = 128, 128, 4  # hidden_dim, nfc, num_classes

    key = jax.random.PRNGKey(0)
    k_words, k_params = jax.random.split(key)
    words = jax.random.randint(k_words, (B, T), 0, VOCAB, dtype=jnp.int32)
    params = init_params(k_params, VOCAB, E, H, NFC, C)

    logits = bilstm_sentiment(words, params)
    logits = jax.block_until_ready(logits)

    ref = jax.block_until_ready(reference(words, params))
    assert logits.shape == (B, C), logits.shape
    np.testing.assert_allclose(np.asarray(logits), np.asarray(ref),
                               rtol=2e-2, atol=2e-2)
    print("KERNEL_OK")
</pallas_src>

<mosaic_0001>
module attributes {stable_mosaic.version = 11 : i64} {
  func.func @_proj_kernel(%arg0: i32, %arg1: memref<8x8x16xbf16, #tpu.memory_space<vmem>>, %arg2: memref<16x1024xbf16, #tpu.memory_space<vmem>>, %arg3: memref<1x1024xf32, #tpu.memory_space<vmem>>, %arg4: memref<8x8x512xbf16, #tpu.memory_space<vmem>>, %arg5: memref<8x8x512xbf16, #tpu.memory_space<vmem>>) attributes {dimension_semantics = [#tpu.dimension_semantics<parallel>], iteration_bounds = array<i64: 1>, scalar_prefetch = 0 : i64, scratch_operands = 0 : i64, tpu.core_type = #tpu.core_type<tc>, window_params = [{transform_indices = @transform_0, window_bounds = array<i64: 8, 8, 16>}, {pipeline_mode = #tpu.pipeline_mode<synchronous>, transform_indices = @transform_1, window_bounds = array<i64: 16, 1024>}, {pipeline_mode = #tpu.pipeline_mode<synchronous>, transform_indices = @transform_2, window_bounds = array<i64: 1, 1024>}, {transform_indices = @transform_3, window_bounds = array<i64: 8, 8, 512>}, {transform_indices = @transform_4, window_bounds = array<i64: 8, 8, 512>}]} {
    %c0 = arith.constant 0 : index
    %c0_0 = arith.constant 0 : index
    %c0_1 = arith.constant 0 : index
    %0 = vector.load %arg1[%c0, %c0_0, %c0_1] : memref<8x8x16xbf16, #tpu.memory_space<vmem>>, vector<8x8x16xbf16>
    %1 = vector.shape_cast %0 : vector<8x8x16xbf16> to vector<64x16xbf16>
    %c0_2 = arith.constant 0 : index
    %c0_3 = arith.constant 0 : index
    %2 = vector.load %arg2[%c0_2, %c0_3] : memref<16x1024xbf16, #tpu.memory_space<vmem>>, vector<16x1024xbf16>
    %cst = arith.constant dense<0.000000e+00> : vector<64x1024xf32>
    %3 = tpu.matmul %1, %2, %cst {dimension_numbers = #tpu.dot_dimension_numbers<[1], [0], [0], [1], [0, 0, 1, 1], [], []>} : vector<64x16xbf16>, vector<16x1024xbf16>, vector<64x1024xf32> -> vector<64x1024xf32>
    %c0_4 = arith.constant 0 : index
    %c0_5 = arith.constant 0 : index
    %4 = vector.load %arg3[%c0_4, %c0_5] : memref<1x1024xf32, #tpu.memory_space<vmem>>, vector<1x1024xf32>
    %5 = vector.broadcast %4 : vector<1x1024xf32> to vector<64x1024xf32>
    %6 = arith.addf %3, %5 : vector<64x1024xf32>
    %7 = vector.shape_cast %6 : vector<64x1024xf32> to vector<8x8x1024xf32>
    %8 = vector.extract_strided_slice %7 {offsets = [0, 0, 0], sizes = [8, 8, 512], strides = [1, 1, 1]} : vector<8x8x1024xf32> to vector<8x8x512xf32>
    %9 = arith.truncf %8 : vector<8x8x512xf32> to vector<8x8x512xbf16>
    %c0_6 = arith.constant 0 : index
    %c0_7 = arith.constant 0 : index
    %c0_8 = arith.constant 0 : index
    %10 = vector.load %arg4[%c0_6, %c0_7, %c0_8] : memref<8x8x512xbf16, #tpu.memory_space<vmem>>, vector<8x8x512xbf16>
    tpu.vector_store %arg4[%c0_6, %c0_7, %c0_8], %9 {strides = array<i32>} : memref<8x8x512xbf16, #tpu.memory_space<vmem>>, vector<8x8x512xbf16>,
    %11 = vector.extract_strided_slice %7 {offsets = [0, 0, 512], sizes = [8, 8, 512], strides = [1, 1, 1]} : vector<8x8x1024xf32> to vector<8x8x512xf32>
    %12 = arith.truncf %11 : vector<8x8x512xf32> to vector<8x8x512xbf16>
    %c0_9 = arith.constant 0 : index
    %c0_10 = arith.constant 0 : index
    %c0_11 = arith.constant 0 : index
    %13 = vector.load %arg5[%c0_9, %c0_10, %c0_11] : memref<8x8x512xbf16, #tpu.memory_space<vmem>>, vector<8x8x512xbf16>
    tpu.vector_store %arg5[%c0_9, %c0_10, %c0_11], %12 {strides = array<i32>} : memref<8x8x512xbf16, #tpu.memory_space<vmem>>, vector<8x8x512xbf16>,
    return
  }
  func.func @transform_0(%arg0: i32) -> (i32, i32, i32) {
    %c0_i32 = arith.constant 0 : i32
    %c0_i32_0 = arith.constant 0 : i32
    %c0_i32_1 = arith.constant 0 : i32
    return %arg0, %c0_i32, %c0_i32_0 : i32, i32, i32
  }
  func.func @transform_1(%arg0: i32) -> (i32, i32) {
    %c0_i32 = arith.constant 0 : i32
    %c0_i32_0 = arith.constant 0 : i32
    %c0_i32_1 = arith.constant 0 : i32
    return %c0_i32, %c0_i32_0 : i32, i32
  }
  func.func @transform_2(%arg0: i32) -> (i32, i32) {
    %c0_i32 = arith.constant 0 : i32
    %c0_i32_0 = arith.constant 0 : i32
    %c0_i32_1 = arith.constant 0 : i32
    return %c0_i32, %c0_i32_0 : i32, i32
  }
  func.func @transform_3(%arg0: i32) -> (i32, i32, i32) {
    %c0_i32 = arith.constant 0 : i32
    %c0_i32_0 = arith.constant 0 : i32
    %c0_i32_1 = arith.constant 0 : i32
    return %arg0, %c0_i32, %c0_i32_0 : i32, i32, i32
  }
  func.func @transform_4(%arg0: i32) -> (i32, i32, i32) {
    %c0_i32 = arith.constant 0 : i32
    %c0_i32_0 = arith.constant 0 : i32
    %c0_i32_1 = arith.constant 0 : i32
    return %arg0, %c0_i32, %c0_i32_0 : i32, i32, i32
  }
}

</mosaic_0001>

<llo_original>
// kernel: tpu_custom_call.1
$region0: #{tpu_custom_call.1}
  #allocation0 [shape = 'u32[]', space=smem, size = 0x4, offset = 0x4, fixed_abs, tag = 'smem constant byte address 0x4 - core index']
  #allocation1 [shape = 'u32[144,128]{1,0:T(1,128)}', space=vmem, size = 0x12000, scoped, tag = 'internal scratch']
  %s0 = inlined_call_operand.hbm [shape: bf16[8,8,16], index: 0, kind: input, shape index: {}]
  %s1 = inlined_call_operand.hbm [shape: bf16[16,1024], index: 1, kind: input, shape index: {}]
  %s2 = inlined_call_operand.hbm [shape: f32[1,1024], index: 2, kind: input, shape index: {}]
  %s3 = inlined_call_operand.hbm [shape: bf16[8,8,512], index: 3, kind: output, shape index: {0}]
  %s4 = inlined_call_operand.hbm [shape: bf16[8,8,512], index: 4, kind: output, shape index: {1}]
  %5 = xla_tuple %s3, %s4
  %s6 = sld [smem:[#allocation0]]
  $region42: #{tpu_custom_call.1} parent=0
    _
  %s8 = ssub.s32 1, %s6
  %s9 = scalar_select 0, %s8, %s6
  $region1: #{tpu_custom_call.1} parent=0
    #allocation2 [shape = 'u8[16384]{0}', space=vmem, size = 0x4000, scoped, tag = 'input window, operand 0, single buffered']
    #allocation3 [shape = 's32[1]{0}', space=sflag, size = 0x4, scoped, tag = 'scoped memory for tpu_custom_call.1']
    #allocation4 [shape = 's32[1]{0}', space=sflag, size = 0x4, scoped, tag = 'scoped memory for tpu_custom_call.1']
    #allocation5 [shape = 'u8[32768]{0}', space=vmem, size = 0x8000, scoped, tag = 'input window, operand 1, single buffered']
    #allocation6 [shape = 's32[1]{0}', space=sflag, size = 0x4, scoped, tag = 'scoped memory for tpu_custom_call.1']
    #allocation7 [shape = 'u8[4096]{0}', space=vmem, size = 0x1000, scoped, tag = 'input window, operand 2, single buffered']
    #allocation8 [shape = 'u8[65536]{0}', space=vmem, size = 0x10000, scoped, tag = 'output window, operand 0, single buffered']
    #allocation9 [shape = 'u8[65536]{0}', space=vmem, size = 0x10000, scoped, tag = 'output window, operand 1, single buffered']
    #allocation10 [shape = 's32[1]{0}', space=sflag, size = 0x4, scoped, tag = 'scoped memory for tpu_custom_call.1']
    %10 = vsyncpa [#allocation3], 0
    %11 = vsyncpa [#allocation6], 0
    %12 = vsyncpa [#allocation4], 0
    %13 = vsyncpa [#allocation10], 0
    // Predicated region
    $region2: #{tpu_custom_call.1} parent=1 // pred_check
      _
    $region3: #{tpu_custom_call.1} parent=1 // pred_check_branch
      %15 = sbr.rel (0) target = $region5
    $region4: #{tpu_custom_call.1} parent=1 // pred_region
      %s17 = ssub.s32 512, 512
      %18 = vsyncadd [#allocation3], %s17
      %s19 = sshll.u32 [#allocation2], 4
      %s20 = int_to_ptr.vmem [resolvable:$true] %s19
      %25 = dma.hbm_to_vmem [thread:$0]  %s0, 512, %s20, [#allocation3], 64, 64, 4
    $region5: #{tpu_custom_call.1} parent=1 // pred_fallthru
      _
    // Predicated region
    $region6: #{tpu_custom_call.1} parent=1 // pred_check
      _
    $region7: #{tpu_custom_call.1} parent=1 // pred_check_branch
      %27 = sbr.rel (0) target = $region9
    $region8: #{tpu_custom_call.1} parent=1 // pred_region
      %s29 = ssub.s32 1024, 1024
      %30 = vsyncadd [#allocation6], %s29
      %s31 = sshll.u32 [#allocation5], 4
      %s32 = int_to_ptr.vmem [resolvable:$true] %s31
      %37 = dma.hbm_to_vmem [thread:$0]  %s1, 1024, %s32, [#allocation6], 512, 512, 32
    $region9: #{tpu_custom_call.1} parent=1 // pred_fallthru
      _
    // Predicated region
    $region10: #{tpu_custom_call.1} parent=1 // pred_check
      _
    $region11: #{tpu_custom_call.1} parent=1 // pred_check_branch
      %39 = sbr.rel (0) target = $region13
    $region12: #{tpu_custom_call.1} parent=1 // pred_region
      %s41 = ssub.s32 128, 128
      %42 = vsyncadd [#allocation6], %s41
      %s44 = sshll.u32 [#allocation7], 4
      %s45 = int_to_ptr.vmem [resolvable:$true] %s44
      %47 = dma.hbm_to_vmem [thread:$0]  %s2, 128, %s45, [#allocation6]
    $region13: #{tpu_custom_call.1} parent=1 // pred_fallthru
      _
    // Predicated region
    $region14: #{tpu_custom_call.1} parent=1 // pred_check
      _
    $region15: #{tpu_custom_call.1} parent=1 // pred_check_branch
      %49 = sbr.rel (0) target = $region17
    $region16: #{tpu_custom_call.1} parent=1 // pred_region
      %50 = dma.done [#allocation3], 512
    $region17: #{tpu_custom_call.1} parent=1 // pred_fallthru
      _
    // Predicated region
    $region18: #{tpu_custom_call.1} parent=1 // pred_check
      _
    $region19: #{tpu_custom_call.1} parent=1 // pred_check_branch
      %52 = sbr.rel (0) target = $region21
    $region20: #{tpu_custom_call.1} parent=1 // pred_region
      %53 = dma.done [#allocation6], 1024
    $region21: #{tpu_custom_call.1} parent=1 // pred_fallthru
      _
    // Predicated region
    $region22: #{tpu_custom_call.1} parent=1 // pred_check
      _
    $region23: #{tpu_custom_call.1} parent=1 // pred_check_branch
      %55 = sbr.rel (0) target = $region25
    $region24: #{tpu_custom_call.1} parent=1 // pred_region
      %56 = dma.done [#allocation6], 128
    $region25: #{tpu_custom_call.1} parent=1 // pred_fallthru
      _
    %v58 = vld [vmem:[#allocation2] sm:$0xf]
    %v59 = vld [vmem:[#allocation2 + $0x4] sm:$0xf]
    %v60 = vld [vmem:[#allocation2 + $0x8] sm:$0xf]
    %v61 = vld [vmem:[#allocation2 + $0xc] sm:$0xf]
    %v62 = vld [vmem:[#allocation2 + $0x10] sm:$0xf]
    %v63 = vld [vmem:[#allocation2 + $0x14] sm:$0xf]
    %v64 = vld [vmem:[#allocation2 + $0x18] sm:$0xf]
    %v65 = vld [vmem:[#allocation2 + $0x1c] sm:$0xf]
    %v66 = vld [vmem:[#allocation5] sm:$0xff]
    %v67 = vld [vmem:[#allocation5 + $0x8] sm:$0xff]
    %v68 = vld [vmem:[#allocation5 + $0x10] sm:$0xff]
    %v69 = vld [vmem:[#allocation5 + $0x18] sm:$0xff]
    %v70 = vld [vmem:[#allocation5 + $0x20] sm:$0xff]
    %v71 = vld [vmem:[#allocation5 + $0x28] sm:$0xff]
    %v72 = vld [vmem:[#allocation5 + $0x30] sm:$0xff]
    %v73 = vld [vmem:[#allocation5 + $0x38] sm:$0xff]
    %v74 = vld [vmem:[#allocation7] sm:$0xff]
    %v76 = vlaneseq
    %v77 = vshrl.u32 %v76, 7
    %v78 = vsub.s32 0, %v77
    %v79 = vrot.slane %v74, %v78
    %v80 = vlaneseq
    %v81 = vshrl.u32 %v80, 7
    %v82 = vsub.s32 1, %v81
    %v83 = vrot.slane %v74, %v82
    %v84 = vlaneseq
    %v85 = vshrl.u32 %v84, 7
    %v86 = vsub.s32 2, %v85
    %v87 = vrot.slane %v74, %v86
    %v88 = vlaneseq
    %v89 = vshrl.u32 %v88, 7
    %v90 = vsub.s32 3, %v89
    %v91 = vrot.slane %v74, %v90
    %v92 = vlaneseq
    %v93 = vshrl.u32 %v92, 7
    %v94 = vsub.s32 4, %v93
    %v95 = vrot.slane %v74, %v94
    %v96 = vlaneseq
    %v97 = vshrl.u32 %v96, 7
    %v98 = vsub.s32 5, %v97
    %v99 = vrot.slane %v74, %v98
    %v100 = vlaneseq
    %v101 = vshrl.u32 %v100, 7
    %v102 = vsub.s32 6, %v101
    %v103 = vrot.slane %v74, %v102
    %v104 = vlaneseq
    %v105 = vshrl.u32 %v104, 7
    %v106 = vsub.s32 7, %v105
    %v107 = vrot.slane %v74, %v106
    %v124 = vunpack.c.l.b16 %v58
    %v125 = vunpack.c.l.b16 %v59
    %v126 = vunpack.c.l.b16 %v60
    %v127 = vunpack.c.l.b16 %v61
    %v128 = vunpack.c.l.b16 %v62
    %v129 = vunpack.c.l.b16 %v63
    %v130 = vunpack.c.l.b16 %v64
    %v131 = vunpack.c.l.b16 %v65
    %v132 = vpack.c.b16 %v125, %v124
    %v133 = vpack.c.b16 %v127, %v126
    %v134 = vpack.c.b16 %v129, %v128
    %v135 = vpack.c.b16 %v131, %v130
    %v144 = vunpack.c.l.b16 %v66
    %v145 = vunpack.c.h.b16 %v66
    %v146 = vunpack.c.l.b16 %v67
    %v147 = vunpack.c.h.b16 %v67
    %v148 = vunpack.c.l.b16 %v68
    %v149 = vunpack.c.h.b16 %v68
    %v150 = vunpack.c.l.b16 %v69
    %v151 = vunpack.c.h.b16 %v69
    %v152 = vunpack.c.l.b16 %v70
    %v153 = vunpack.c.h.b16 %v70
    %v154 = vunpack.c.l.b16 %v71
    %v155 = vunpack.c.h.b16 %v71
    %v156 = vunpack.c.l.b16 %v72
    %v157 = vunpack.c.h.b16 %v72
    %v158 = vunpack.c.l.b16 %v73
    %v159 = vunpack.c.h.b16 %v73
    %v160 = vpack.c.b16 %v152, %v144
    %v161 = vpack.c.b16 %v153, %v145
    %v162 = vpack.c.b16 %v154, %v146
    %v163 = vpack.c.b16 %v155, %v147
    %v164 = vpack.c.b16 %v156, %v148
    %v165 = vpack.c.b16 %v157, %v149
    %v166 = vpack.c.b16 %v158, %v150
    %v167 = vpack.c.b16 %v159, %v151
    %vm176 = vcmask 130048
    %v178 = vsel %vm176, %v132, 0
    %v181 = vsel %vm176, %v133, 0
    %v184 = vsel %vm176, %v134, 0
    %v187 = vsel %vm176, %v135, 0
    %189 = vmatprep.subr.bf16.mxu0 0
    %190 = vmatpush1.bf16.msra.mxu0 0
    %191 = vmatprep.subr.bf16.mxu0 0
    %192 = vmatpush1.bf16.msra.mxu0 0
    %193 = vmatprep.subr.bf16.mxu0 0
    %194 = vmatpush1.bf16.msra.mxu0 0
    %195 = vmatprep.subr.bf16.mxu0 0
    %196 = vmatpush1.bf16.msra.mxu0 0
    %197 = vmatprep.subr.bf16.mxu0 0
    %198 = vmatpush1.bf16.msra.mxu0 0
    %199 = vmatprep.subr.bf16.mxu0 0
    %200 = vmatpush1.bf16.msra.mxu0 0
    %201 = vmatprep.subr.bf16.mxu0 0
    %202 = vmatpush1.bf16.msra.mxu0 0
    %203 = vmatprep.subr.bf16.mxu0 %v161
    %204 = vmatpush1.bf16.msra.mxu0 %v160
    %205 = vmatprep.subr.bf16.mxu0 0
    %206 = vmatpush2.bf16.msra.mxu0 0
    %207 = vmatprep.subr.bf16.mxu0 0
    %208 = vmatpush2.bf16.msra.mxu0 0
    %209 = vmatprep.subr.bf16.mxu0 0
    %210 = vmatpush2.bf16.msra.mxu0 0
    %211 = vmatprep.subr.bf16.mxu0 0
    %212 = vmatpush2.bf16.msra.mxu0 0
    %213 = vmatprep.subr.bf16.mxu0 0
    %214 = vmatpush2.bf16.msra.mxu0 0
    %215 = vmatprep.subr.bf16.mxu0 0
    %216 = vmatpush2.bf16.msra.mxu0 0
    %217 = vmatprep.subr.bf16.mxu0 0
    %218 = vmatpush2.bf16.msra.mxu0 0
    %219 = vmatprep.subr.bf16.mxu0 0
    %220 = vmatpush2.bf16.msra.mxu0 0
    %221 = vmatprep.mubr.bf16.mxu0 0
    %222 = vmatmul.mubr.bf16.gmra.mxu0 %v178
    %v223 = vpop.f32.mrf.mxu0
    %v224 = vadd.f32 %v79, %v223
    %v225 = vpop.f32.mrf.mxu0
    %v226 = vadd.f32 %v83, %v225
    %v227 = vpop.f32.mrf.mxu0
    %v228 = vadd.f32 %v79, %v227
    %v229 = vpop.f32.mrf.mxu0
    %v230 = vadd.f32 %v83, %v229
    %231 = vmatprep.mubr.bf16.mxu0 0
    %232 = vmatmul.mubr.bf16.gmra.mxu0 %v181
    %v233 = vpop.f32.mrf.mxu0
    %v234 = vadd.f32 %v79, %v233
    %v235 = vpop.f32.mrf.mxu0
    %v236 = vadd.f32 %v83, %v235
    %v237 = vpop.f32.mrf.mxu0
    %v238 = vadd.f32 %v79, %v237
    %v239 = vpop.f32.mrf.mxu0
    %v240 = vadd.f32 %v83, %v239
    %241 = vmatprep.mubr.bf16.mxu0 0
    %242 = vmatmul.mubr.bf16.gmra.mxu0 %v184
    %v243 = vpop.f32.mrf.mxu0
    %v244 = vadd.f32 %v79, %v243
    %v245 = vpop.f32.mrf.mxu0
    %v246 = vadd.f32 %v83, %v245
    %v247 = vpop.f32.mrf.mxu0
    %v248 = vadd.f32 %v79, %v247
    %v249 = vpop.f32.mrf.mxu0
    %v250 = vadd.f32 %v83, %v249
    %251 = vmatprep.mubr.bf16.mxu0 0
    %252 = vmatmul.mubr.bf16.gmra.mxu0 %v187
    %v253 = vpop.f32.mrf.mxu0
    %v254 = vadd.f32 %v79, %v253
    %v255 = vpop.f32.mrf.mxu0
    %v256 = vadd.f32 %v83, %v255
    %v257 = vpop.f32.mrf.mxu0
    %v258 = vadd.f32 %v79, %v257
    %v259 = vpop.f32.mrf.mxu0
    %v260 = vadd.f32 %v83, %v259
    %261 = vdwg.mxu0
    %262 = vmatprep.subr.bf16.mxu0 0
    %263 = vmatpush1.bf16.msra.mxu0 0
    %264 = vmatprep.subr.bf16.mxu0 0
    %265 = vmatpush1.bf16.msra.mxu0 0
    %266 = vmatprep.subr.bf16.mxu0 0
    %267 = vmatpush1.bf16.msra.mxu0 0
    %268 = vmatprep.subr.bf16.mxu0 0
    %269 = vmatpush1.bf16.msra.mxu0 0
    %270 = vmatprep.subr.bf16.mxu0 0
    %271 = vmatpush1.bf16.msra.mxu0 0
    %272 = vmatprep.subr.bf16.mxu0 0
    %273 = vmatpush1.bf16.msra.mxu0 0
    %274 = vmatprep.subr.bf16.mxu0 0
    %275 = vmatpush1.bf16.msra.mxu0 0
    %276 = vmatprep.subr.bf16.mxu0 %v163
    %277 = vmatpush1.bf16.msra.mxu0 %v162
    %278 = vmatprep.subr.bf16.mxu0 0
    %279 = vmatpush2.bf16.msra.mxu0 0
    %280 = vmatprep.subr.bf16.mxu0 0
    %281 = vmatpush2.bf16.msra.mxu0 0
    %282 = vmatprep.subr.bf16.mxu0 0
    %283 = vmatpush2.bf16.msra.mxu0 0
    %284 = vmatprep.subr.bf16.mxu0 0
    %285 = vmatpush2.bf16.msra.mxu0 0
    %286 = vmatprep.subr.bf16.mxu0 0
    %287 = vmatpush2.bf16.msra.mxu0 0
    %288 = vmatprep.subr.bf16.mxu0 0
    %289 = vmatpush2.bf16.msra.mxu0 0
    %290 = vmatprep.subr.bf16.mxu0 0
    %291 = vmatpush2.bf16.msra.mxu0 0
    %292 = vmatprep.subr.bf16.mxu0 0
    %293 = vmatpush2.bf16.msra.mxu0 0
    %294 = vmatprep.mubr.bf16.mxu0 0
    %295 = vmatmul.mubr.bf16.gmra.mxu0 %v178
    %v296 = vpop.f32.mrf.mxu0
    %v297 = vadd.f32 %v87, %v296
    %v298 = vpop.f32.mrf.mxu0
    %v299 = vadd.f32 %v91, %v298
    %v300 = vpop.f32.mrf.mxu0
    %v301 = vadd.f32 %v87, %v300
    %v302 = vpop.f32.mrf.mxu0
    %v303 = vadd.f32 %v91, %v302
    %304 = vmatprep.mubr.bf16.mxu0 0
    %305 = vmatmul.mubr.bf16.gmra.mxu0 %v181
    %v306 = vpop.f32.mrf.mxu0
    %v307 = vadd.f32 %v87, %v306
    %v308 = vpop.f32.mrf.mxu0
    %v309 = vadd.f32 %v91, %v308
    %v310 = vpop.f32.mrf.mxu0
    %v311 = vadd.f32 %v87, %v310
    %v312 = vpop.f32.mrf.mxu0
    %v313 = vadd.f32 %v91, %v312
    %314 = vmatprep.mubr.bf16.mxu0 0
    %315 = vmatmul.mubr.bf16.gmra.mxu0 %v184
    %v316 = vpop.f32.mrf.mxu0
    %v317 = vadd.f32 %v87, %v316
    %v318 = vpop.f32.mrf.mxu0
    %v319 = vadd.f32 %v91, %v318
    %v320 = vpop.f32.mrf.mxu0
    %v321 = vadd.f32 %v87, %v320
    %v322 = vpop.f32.mrf.mxu0
    %v323 = vadd.f32 %v91, %v322
    %324 = vmatprep.mubr.bf16.mxu0 0
    %325 = vmatmul.mubr.bf16.gmra.mxu0 %v187
    %v326 = vpop.f32.mrf.mxu0
    %v327 = vadd.f32 %v87, %v326
    %v328 = vpop.f32.mrf.mxu0
    %v329 = vadd.f32 %v91, %v328
    %v330 = vpop.f32.mrf.mxu0
    %v331 = vadd.f32 %v87, %v330
    %v332 = vpop.f32.mrf.mxu0
    %v333 = vadd.f32 %v91, %v332
    %334 = vdwg.mxu0
    %335 = vmatprep.subr.bf16.mxu0 0
    %336 = vmatpush1.bf16.msra.mxu0 0
    %337 = vmatprep.subr.bf16.mxu0 0
    %338 = vmatpush1.bf16.msra.mxu0 0
    %339 = vmatprep.subr.bf16.mxu0 0
    %340 = vmatpush1.bf16.msra.mxu0 0
    %341 = vmatprep.subr.bf16.mxu0 0
    %342 = vmatpush1.bf16.msra.mxu0 0
    %343 = vmatprep.subr.bf16.mxu0 0
    %344 = vmatpush1.bf16.msra.mxu0 0
    %345 = vmatprep.subr.bf16.mxu0 0
    %346 = vmatpush1.bf16.msra.mxu0 0
    %347 = vmatprep.subr.bf16.mxu0 0
    %348 = vmatpush1.bf16.msra.mxu0 0
    %349 = vmatprep.subr.bf16.mxu0 %v165
    %350 = vmatpush1.bf16.msra.mxu0 %v164
    %351 = vmatprep.subr.bf16.mxu0 0
    %352 = vmatpush2.bf16.msra.mxu0 0
    %353 = vmatprep.subr.bf16.mxu0 0
    %354 = vmatpush2.bf16.msra.mxu0 0
    %355 = vmatprep.subr.bf16.mxu0 0
    %356 = vmatpush2.bf16.msra.mxu0 0
    %357 = vmatprep.subr.bf16.mxu0 0
    %358 = vmatpush2.bf16.msra.mxu0 0
    %359 = vmatprep.subr.bf16.mxu0 0
    %360 = vmatpush2.bf16.msra.mxu0 0
    %361 = vmatprep.subr.bf16.mxu0 0
    %362 = vmatpush2.bf16.msra.mxu0 0
    %363 = vmatprep.subr.bf16.mxu0 0
    %364 = vmatpush2.bf16.msra.mxu0 0
    %365 = vmatprep.subr.bf16.mxu0 0
    %366 = vmatpush2.bf16.msra.mxu0 0
    %367 = vmatprep.mubr.bf16.mxu0 0
    %368 = vmatmul.mubr.bf16.gmra.mxu0 %v178
    %v369 = vpop.f32.mrf.mxu0
    %v370 = vadd.f32 %v95, %v369
    %v371 = vpop.f32.mrf.mxu0
    %v372 = vadd.f32 %v99, %v371
    %v373 = vpop.f32.mrf.mxu0
    %v374 = vadd.f32 %v95, %v373
    %v375 = vpop.f32.mrf.mxu0
    %v376 = vadd.f32 %v99, %v375
    %377 = vmatprep.mubr.bf16.mxu0 0
    %378 = vmatmul.mubr.bf16.gmra.mxu0 %v181
    %v379 = vpop.f32.mrf.mxu0
    %v380 = vadd.f32 %v95, %v379
    %v381 = vpop.f32.mrf.mxu0
    %v382 = vadd.f32 %v99, %v381
    %v383 = vpop.f32.mrf.mxu0
    %v384 = vadd.f32 %v95, %v383
    %v385 = vpop.f32.mrf.mxu0
    %v386 = vadd.f32 %v99, %v385
    %387 = vmatprep.mubr.bf16.mxu0 0
    %388 = vmatmul.mubr.bf16.gmra.mxu0 %v184
    %v389 = vpop.f32.mrf.mxu0
    %v390 = vadd.f32 %v95, %v389
    %v391 = vpop.f32.mrf.mxu0
    %v392 = vadd.f32 %v99, %v391
    %v393 = vpop.f32.mrf.mxu0
    %v394 = vadd.f32 %v95, %v393
    %v395 = vpop.f32.mrf.mxu0
    %v396 = vadd.f32 %v99, %v395
    %397 = vmatprep.mubr.bf16.mxu0 0
    %398 = vmatmul.mubr.bf16.gmra.mxu0 %v187
    %v399 = vpop.f32.mrf.mxu0
    %v400 = vadd.f32 %v95, %v399
    %v401 = vpop.f32.mrf.mxu0
    %v402 = vadd.f32 %v99, %v401
    %v403 = vpop.f32.mrf.mxu0
    %v404 = vadd.f32 %v95, %v403
    %v405 = vpop.f32.mrf.mxu0
    %v406 = vadd.f32 %v99, %v405
    %407 = vdwg.mxu0
    %408 = vmatprep.subr.bf16.mxu0 0
    %409 = vmatpush1.bf16.msra.mxu0 0
    %410 = vmatprep.subr.bf16.mxu0 0
    %411 = vmatpush1.bf16.msra.mxu0 0
    %412 = vmatprep.subr.bf16.mxu0 0
    %413 = vmatpush1.bf16.msra.mxu0 0
    %414 = vmatprep.subr.bf16.mxu0 0
    %415 = vmatpush1.bf16.msra.mxu0 0
    %416 = vmatprep.subr.bf16.mxu0 0
    %417 = vmatpush1.bf16.msra.mxu0 0
    %418 = vmatprep.subr.bf16.mxu0 0
    %419 = vmatpush1.bf16.msra.mxu0 0
    %420 = vmatprep.subr.bf16.mxu0 0
    %421 = vmatpush1.bf16.msra.mxu0 0
    %422 = vmatprep.subr.bf16.mxu0 %v167
    %423 = vmatpush1.bf16.msra.mxu0 %v166
    %424 = vmatprep.subr.bf16.mxu0 0
    %425 = vmatpush2.bf16.msra.mxu0 0
    %426 = vmatprep.subr.bf16.mxu0 0
    %427 = vmatpush2.bf16.msra.mxu0 0
    %428 = vmatprep.subr.bf16.mxu0 0
    %429 = vmatpush2.bf16.msra.mxu0 0
    %430 = vmatprep.subr.bf16.mxu0 0
    %431 = vmatpush2.bf16.msra.mxu0 0
    %432 = vmatprep.subr.bf16.mxu0 0
    %433 = vmatpush2.bf16.msra.mxu0 0
    %434 = vmatprep.subr.bf16.mxu0 0
    %435 = vmatpush2.bf16.msra.mxu0 0
    %436 = vmatprep.subr.bf16.mxu0 0
    %437 = vmatpush2.bf16.msra.mxu0 0
    %438 = vmatprep.subr.bf16.mxu0 0
    %439 = vmatpush2.bf16.msra.mxu0 0
    %440 = vmatprep.mubr.bf16.mxu0 0
    %441 = vmatmul.mubr.bf16.gmra.mxu0 %v178
    %v442 = vpop.f32.mrf.mxu0
    %v443 = vadd.f32 %v103, %v442
    %v444 = vpop.f32.mrf.mxu0
    %v445 = vadd.f32 %v107, %v444
    %v446 = vpop.f32.mrf.mxu0
    %v447 = vadd.f32 %v103, %v446
    %v448 = vpop.f32.mrf.mxu0
    %v449 = vadd.f32 %v107, %v448
    %450 = vmatprep.mubr.bf16.mxu0 0
    %451 = vmatmul.mubr.bf16.gmra.mxu0 %v181
    %v452 = vpop.f32.mrf.mxu0
    %v453 = vadd.f32 %v103, %v452
    %v454 = vpop.f32.mrf.mxu0
    %v455 = vadd.f32 %v107, %v454
    %v456 = vpop.f32.mrf.mxu0
    %v457 = vadd.f32 %v103, %v456
    %v458 = vpop.f32.mrf.mxu0
    %v459 = vadd.f32 %v107, %v458
    %460 = vmatprep.mubr.bf16.mxu0 0
    %461 = vmatmul.mubr.bf16.gmra.mxu0 %v184
    %v462 = vpop.f32.mrf.mxu0
    %v463 = vadd.f32 %v103, %v462
    %v464 = vpop.f32.mrf.mxu0
    %v465 = vadd.f32 %v107, %v464
    %v466 = vpop.f32.mrf.mxu0
    %v467 = vadd.f32 %v103, %v466
    %v468 = vpop.f32.mrf.mxu0
    %v469 = vadd.f32 %v107, %v468
    %470 = vmatprep.mubr.bf16.mxu0 0
    %471 = vmatmul.mubr.bf16.gmra.mxu0 %v187
    %v472 = vpop.f32.mrf.mxu0
    %v473 = vadd.f32 %v103, %v472
    %v474 = vpop.f32.mrf.mxu0
    %v475 = vadd.f32 %v107, %v474
    %v476 = vpop.f32.mrf.mxu0
    %v477 = vadd.f32 %v103, %v476
    %v478 = vpop.f32.mrf.mxu0
    %v479 = vadd.f32 %v107, %v478
    %480 = vdwg.mxu0
    %v481 = vpack.c.bf16 %v224, %v224
    %v482 = vpack.c.bf16 %v226, %v226
    %v483 = vpack.c.bf16 %v297, %v297
    %v484 = vpack.c.bf16 %v299, %v299
    %v485 = vpack.c.bf16 %v228, %v228
    %v486 = vpack.c.bf16 %v230, %v230
    %v487 = vpack.c.bf16 %v301, %v301
    %v488 = vpack.c.bf16 %v303, %v303
    %v489 = vpack.c.bf16 %v234, %v234
    %v490 = vpack.c.bf16 %v236, %v236
    %v491 = vpack.c.bf16 %v307, %v307
    %v492 = vpack.c.bf16 %v309, %v309
    %v493 = vpack.c.bf16 %v238, %v238
    %v494 = vpack.c.bf16 %v240, %v240
    %v495 = vpack.c.bf16 %v311, %v311
    %v496 = vpack.c.bf16 %v313, %v313
    %v497 = vpack.c.bf16 %v244, %v244
    %v498 = vpack.c.bf16 %v246, %v246
    %v499 = vpack.c.bf16 %v317, %v317
    %v500 = vpack.c.bf16 %v319, %v319
    %v501 = vpack.c.bf16 %v248, %v248
    %v502 = vpack.c.bf16 %v250, %v250
    %v503 = vpack.c.bf16 %v321, %v321
    %v504 = vpack.c.bf16 %v323, %v323
    %v505 = vpack.c.bf16 %v254, %v254
    %v506 = vpack.c.bf16 %v256, %v256
    %v507 = vpack.c.bf16 %v327, %v327
    %v508 = vpack.c.bf16 %v329, %v329
    %v509 = vpack.c.bf16 %v258, %v258
    %v510 = vpack.c.bf16 %v260, %v260
    %v511 = vpack.c.bf16 %v331, %v331
    %v512 = vpack.c.bf16 %v333, %v333
    %v545 = vunpack.c.l.b16 %v481
    %v546 = vunpack.c.l.b16 %v482
    %v547 = vunpack.c.l.b16 %v483
    %v548 = vunpack.c.l.b16 %v484
    %v549 = vunpack.c.l.b16 %v485
    %v550 = vunpack.c.l.b16 %v486
    %v551 = vunpack.c.l.b16 %v487
    %v552 = vunpack.c.l.b16 %v488
    %v553 = vunpack.c.l.b16 %v489
    %v554 = vunpack.c.l.b16 %v490
    %v555 = vunpack.c.l.b16 %v491
    %v556 = vunpack.c.l.b16 %v492
    %v557 = vunpack.c.l.b16 %v493
    %v558 = vunpack.c.l.b16 %v494
    %v559 = vunpack.c.l.b16 %v495
    %v560 = vunpack.c.l.b16 %v496
    %v561 = vunpack.c.l.b16 %v497
    %v562 = vunpack.c.l.b16 %v498
    %v563 = vunpack.c.l.b16 %v499
    %v564 = vunpack.c.l.b16 %v500
    %v565 = vunpack.c.l.b16 %v501
    %v566 = vunpack.c.l.b16 %v502
    %v567 = vunpack.c.l.b16 %v503
    %v568 = vunpack.c.l.b16 %v504
    %v569 = vunpack.c.l.b16 %v505
    %v570 = vunpack.c.l.b16 %v506
    %v571 = vunpack.c.l.b16 %v507
    %v572 = vunpack.c.l.b16 %v508
    %v573 = vunpack.c.l.b16 %v509
    %v574 = vunpack.c.l.b16 %v510
    %v575 = vunpack.c.l.b16 %v511
    %v576 = vunpack.c.l.b16 %v512
    %v577 = vpack.c.b16 %v546, %v545
    %v578 = vpack.c.b16 %v548, %v547
    %v579 = vpack.c.b16 %v550, %v549
    %v580 = vpack.c.b16 %v552, %v551
    %v581 = vpack.c.b16 %v554, %v553
    %v582 = vpack.c.b16 %v556, %v555
    %v583 = vpack.c.b16 %v558, %v557
    %v584 = vpack.c.b16 %v560, %v559
    %v585 = vpack.c.b16 %v562, %v561
    %v586 = vpack.c.b16 %v564, %v563
    %v587 = vpack.c.b16 %v566, %v565
    %v588 = vpack.c.b16 %v568, %v567
    %v589 = vpack.c.b16 %v570, %v569
    %v590 = vpack.c.b16 %v572, %v571
    %v591 = vpack.c.b16 %v574, %v573
    %v592 = vpack.c.b16 %v576, %v575
    %609 = vst [vmem:[#allocation8] sm:$0xff] %v577
    %610 = vst [vmem:[#allocation8 + $0x8] sm:$0xff] %v578
    %611 = vst [vmem:[#allocation8 + $0x10] sm:$0xff] %v579
    %612 = vst [vmem:[#allocation8 + $0x18] sm:$0xff] %v580
    %613 = vst [vmem:[#allocation8 + $0x20] sm:$0xff] %v581
    %614 = vst [vmem:[#allocation8 + $0x28] sm:$0xff] %v582
    %615 = vst [vmem:[#allocation8 + $0x30] sm:$0xff] %v583
    %616 = vst [vmem:[#allocation8 + $0x38] sm:$0xff] %v584
    %617 = vst [vmem:[#allocation8 + $0x40] sm:$0xff] %v585
    %618 = vst [vmem:[#allocation8 + $0x48] sm:$0xff] %v586
    %619 = vst [vmem:[#allocation8 + $0x50] sm:$0xff] %v587
    %620 = vst [vmem:[#allocation8 + $0x58] sm:$0xff] %v588
    %621 = vst [vmem:[#allocation8 + $0x60] sm:$0xff] %v589
    %622 = vst [vmem:[#allocation8 + $0x68] sm:$0xff] %v590
    %623 = vst [vmem:[#allocation8 + $0x70] sm:$0xff] %v591
    %624 = vst [vmem:[#allocation8 + $0x78] sm:$0xff] %v592
    %v625 = vpack.c.bf16 %v370, %v370
    %v626 = vpack.c.bf16 %v372, %v372
    %v627 = vpack.c.bf16 %v443, %v443
    %v628 = vpack.c.bf16 %v445, %v445
    %v629 = vpack.c.bf16 %v374, %v374
    %v630 = vpack.c.bf16 %v376, %v376
    %v631 = vpack.c.bf16 %v447, %v447
    %v632 = vpack.c.bf16 %v449, %v449
    %v633 = vpack.c.bf16 %v380, %v380
    %v634 = vpack.c.bf16 %v382, %v382
    %v635 = vpack.c.bf16 %v453, %v453
    %v636 = vpack.c.bf16 %v455, %v455
    %v637 = vpack.c.bf16 %v384, %v384
    %v638 = vpack.c.bf16 %v386, %v386
    %v639 = vpack.c.bf16 %v457, %v457
    %v640 = vpack.c.bf16 %v459, %v459
    %v641 = vpack.c.bf16 %v390, %v390
    %v642 = vpack.c.bf16 %v392, %v392
    %v643 = vpack.c.bf16 %v463, %v463
    %v644 = vpack.c.bf16 %v465, %v465
    %v645 = vpack.c.bf16 %v394, %v394
    %v646 = vpack.c.bf16 %v396, %v396
    %v647 = vpack.c.bf16 %v467, %v467
    %v648 = vpack.c.bf16 %v469, %v469
    %v649 = vpack.c.bf16 %v400, %v400
    %v650 = vpack.c.bf16 %v402, %v402
    %v651 = vpack.c.bf16 %v473, %v473
    %v652 = vpack.c.bf16 %v475, %v475
    %v653 = vpack.c.bf16 %v404, %v404
    %v654 = vpack.c.bf16 %v406, %v406
    %v655 = vpack.c.bf16 %v477, %v477
    %v656 = vpack.c.bf16 %v479, %v479
    %v689 = vunpack.c.l.b16 %v625
    %v690 = vunpack.c.l.b16 %v626
    %v691 = vunpack.c.l.b16 %v627
    %v692 = vunpack.c.l.b16 %v628
    %v693 = vunpack.c.l.b16 %v629
    %v694 = vunpack.c.l.b16 %v630
    %v695 = vunpack.c.l.b16 %v631
    %v696 = vunpack.c.l.b16 %v632
    %v697 = vunpack.c.l.b16 %v633
    %v698 = vunpack.c.l.b16 %v634
    %v699 = vunpack.c.l.b16 %v635
    %v700 = vunpack.c.l.b16 %v636
    %v701 = vunpack.c.l.b16 %v637
    %v702 = vunpack.c.l.b16 %v638
    %v703 = vunpack.c.l.b16 %v639
    %v704 = vunpack.c.l.b16 %v640
    %v705 = vunpack.c.l.b16 %v641
    %v706 = vunpack.c.l.b16 %v642
    %v707 = vunpack.c.l.b16 %v643
    %v708 = vunpack.c.l.b16 %v644
    %v709 = vunpack.c.l.b16 %v645
    %v710 = vunpack.c.l.b16 %v646
    %v711 = vunpack.c.l.b16 %v647
    %v712 = vunpack.c.l.b16 %v648
    %v713 = vunpack.c.l.b16 %v649
    %v714 = vunpack.c.l.b16 %v650
    %v715 = vunpack.c.l.b16 %v651
    %v716 = vunpack.c.l.b16 %v652
    %v717 = vunpack.c.l.b16 %v653
    %v718 = vunpack.c.l.b16 %v654
    %v719 = vunpack.c.l.b16 %v655
    %v720 = vunpack.c.l.b16 %v656
    %v721 = vpack.c.b16 %v690, %v689
    %v722 = vpack.c.b16 %v692, %v691
    %v723 = vpack.c.b16 %v694, %v693
    %v724 = vpack.c.b16 %v696, %v695
    %v725 = vpack.c.b16 %v698, %v697
    %v726 = vpack.c.b16 %v700, %v699
    %v727 = vpack.c.b16 %v702, %v701
    %v728 = vpack.c.b16 %v704, %v703
    %v729 = vpack.c.b16 %v706, %v705
    %v730 = vpack.c.b16 %v708, %v707
    %v731 = vpack.c.b16 %v710, %v709
    %v732 = vpack.c.b16 %v712, %v711
    %v733 = vpack.c.b16 %v714, %v713
    %v734 = vpack.c.b16 %v716, %v715
    %v735 = vpack.c.b16 %v718, %v717
    %v736 = vpack.c.b16 %v720, %v719
    %753 = vst [vmem:[#allocation9] sm:$0xff] %v721
    %754 = vst [vmem:[#allocation9 + $0x8] sm:$0xff] %v722
    %755 = vst [vmem:[#allocation9 + $0x10] sm:$0xff] %v723
    %756 = vst [vmem:[#allocation9 + $0x18] sm:$0xff] %v724
    %757 = vst [vmem:[#allocation9 + $0x20] sm:$0xff] %v725
    %758 = vst [vmem:[#allocation9 + $0x28] sm:$0xff] %v726
    %759 = vst [vmem:[#allocation9 + $0x30] sm:$0xff] %v727
    %760 = vst [vmem:[#allocation9 + $0x38] sm:$0xff] %v728
    %761 = vst [vmem:[#allocation9 + $0x40] sm:$0xff] %v729
    %762 = vst [vmem:[#allocation9 + $0x48] sm:$0xff] %v730
    %763 = vst [vmem:[#allocation9 + $0x50] sm:$0xff] %v731
    %764 = vst [vmem:[#allocation9 + $0x58] sm:$0xff] %v732
    %765 = vst [vmem:[#allocation9 + $0x60] sm:$0xff] %v733
    %766 = vst [vmem:[#allocation9 + $0x68] sm:$0xff] %v734
    %767 = vst [vmem:[#allocation9 + $0x70] sm:$0xff] %v735
    %768 = vst [vmem:[#allocation9 + $0x78] sm:$0xff] %v736
    // Predicated region
    $region26: #{tpu_custom_call.1} parent=1 // pred_check
      _
    $region27: #{tpu_custom_call.1} parent=1 // pred_check_branch
      %770 = sbr.rel (0) target = $region29
    $region28: #{tpu_custom_call.1} parent=1 // pred_region
      %s772 = ssub.s32 2048, 2048
      %773 = vsyncadd [#allocation4], %s772
      %s774 = sshll.u32 [#allocation8], 4
      %s775 = int_to_ptr.vmem [resolvable:$true] %s774
      %780 = dma.vmem_to_hbm [thread:$0]  %s775, 2048, %s3, [#allocation4], 256, 256, 16
    $region29: #{tpu_custom_call.1} parent=1 // pred_fallthru
      _
    // Predicated region
    $region30: #{tpu_custom_call.1} parent=1 // pred_check
      _
    $region31: #{tpu_custom_call.1} parent=1 // pred_check_branch
      %782 = sbr.rel (0) target = $region33
    $region32: #{tpu_custom_call.1} parent=1 // pred_region
      %s784 = ssub.s32 2048, 2048
      %785 = vsyncadd [#allocation10], %s784
      %s786 = sshll.u32 [#allocation9], 4
      %s787 = int_to_ptr.vmem [resolvable:$true] %s786
      %792 = dma.vmem_to_hbm [thread:$0]  %s787, 2048, %s4, [#allocation10], 256, 256, 16
    $region33: #{tpu_custom_call.1} parent=1 // pred_fallthru
      _
    // Predicated region
    $region34: #{tpu_custom_call.1} parent=1 // pred_check
      _
    $region35: #{tpu_custom_call.1} parent=1 // pred_check_branch
      %794 = sbr.rel (0) target = $region37
    $region36: #{tpu_custom_call.1} parent=1 // pred_region
      %795 = dma.done [#allocation4], 2048
    $region37: #{tpu_custom_call.1} parent=1 // pred_fallthru
      _
    // Predicated region
    $region38: #{tpu_custom_call.1} parent=1 // pred_check
      _
    $region39: #{tpu_custom_call.1} parent=1 // pred_check_branch
      %797 = sbr.rel (0) target = $region41
    $region40: #{tpu_custom_call.1} parent=1 // pred_region
      %798 = dma.done [#allocation10], 2048
    $region41: #{tpu_custom_call.1} parent=1 // pred_fallthru
      _
    %799 = vsyncpa [#allocation3], 1
    %800 = vsyncpa [#allocation6], 1
    %801 = vsyncpa [#allocation4], 1
    %802 = vsyncpa [#allocation10], 1

</llo_original>
